<compile_context>
chip_gen: v6e
topology: v6e:2x2x1
jax: 0.10.0
libtpu: 0.0.40
codegen_flags: <defaults>
</compile_context>

<pallas_src>
import functools

import jax
import jax.numpy as jnp
from jax import lax
from jax.experimental import pallas as pl
from jax.experimental.pallas import tpu as pltpu


def _round_up(v, m):
    return ((v + m - 1) // m) * m


def _cdiv(a, b):
    return (a + b - 1) // b


def _neg_pea_kernel(x_ref, y_ref, loss_ref, sx, sy, sxy, sxx, syy,
                    *, true_t, tile_t, n_strips, ragged_t):
    k = pl.program_id(1)  # reduction step along T (last grid axis)
    tile_n = sx.shape[0]

    @pl.when(k == 0)
    def _init():
        sx[...] = jnp.zeros_like(sx)
        sy[...] = jnp.zeros_like(sy)
        sxy[...] = jnp.zeros_like(sxy)
        sxx[...] = jnp.zeros_like(sxx)
        syy[...] = jnp.zeros_like(syy)

    if ragged_t:
        # Hoisted loop invariants: lane index within a 128-wide strip and the
        # number of valid columns remaining in this T tile.
        lane_idx = lax.broadcasted_iota(jnp.int32, (tile_n, 128), 1)
        cols_left = jnp.int32(true_t) - k * tile_t

    def strip_body(j, carry):
        base = j * 128
        xs = x_ref[:, pl.ds(pl.multiple_of(base, 128), 128)].astype(jnp.float32)
        ys = y_ref[:, pl.ds(pl.multiple_of(base, 128), 128)].astype(jnp.float32)
        if ragged_t:
            # Mask out-of-range columns of the last T tile (stale VMEM there),
            # so zeros contribute nothing to the raw sums.
            valid = lane_idx < (cols_left - base)
            xs = jnp.where(valid, xs, 0.0)
            ys = jnp.where(valid, ys, 0.0)
        # Lane-partial accumulation: pure VPU adds, no per-step XLU reductions.
        sx[...] += xs
        sy[...] += ys
        sxy[...] += xs * ys
        sxx[...] += xs * xs
        syy[...] += ys * ys
        return carry

    lax.fori_loop(0, n_strips, strip_body, 0, unroll=min(8, n_strips))

    @pl.when(k == pl.num_programs(1) - 1)
    def _finalize():
        T = jnp.float32(true_t)
        ssx = jnp.sum(sx[...], axis=1, keepdims=True)
        ssy = jnp.sum(sy[...], axis=1, keepdims=True)
        ssxy = jnp.sum(sxy[...], axis=1, keepdims=True)
        ssxx = jnp.sum(sxx[...], axis=1, keepdims=True)
        ssyy = jnp.sum(syy[...], axis=1, keepdims=True)
        p_coeff = T * ssxy - ssx * ssy
        var = (T * ssxx - ssx * ssx) * (T * ssyy - ssy * ssy)
        # rsqrt fuses sqrt + divide into one EUP op + a VPU multiply.
        loss_ref[...] = 1.0 - p_coeff * lax.rsqrt(var)


def _neg_pea_loss_ref(x, y):
    """Pure-JAX reference mirroring the PyTorch code (also the tiny-size path)."""
    if x.ndim == 1:
        x = x[None, :]
        y = y[None, :]
    x = x.astype(jnp.float32)
    y = y.astype(jnp.float32)
    T = x.shape[1]
    p = T * jnp.sum(x * y, axis=1) - jnp.sum(x, axis=1) * jnp.sum(y, axis=1)
    norm = jnp.sqrt(
        (T * jnp.sum(x ** 2, axis=1) - jnp.sum(x, axis=1) ** 2)
        * (T * jnp.sum(y ** 2, axis=1) - jnp.sum(y, axis=1) ** 2)
    )
    return jnp.mean(1.0 - p / norm)


def neg_pea_loss(x, y, *, tile_n=None, tile_t=None, use_pallas=None):
    """JAX/Pallas equivalent of NegPeaLoss.forward(x, y)."""
    x = jnp.asarray(x)
    y = jnp.asarray(y)
    if x.ndim == 1:
        x = x[None, :]
        y = y[None, :]
    N, T = x.shape

    if use_pallas is None:
        # At a few KB of input the fixed launch overhead dominates; skip Pallas.
        use_pallas = N * T >= (1 << 15)
    if not use_pallas:
        return _neg_pea_loss_ref(x, y)

    # --- tile_n: (8-aligned); ensure >=2 tiles on the parallel axis when
    # possible so both v7x TensorCores get work for this mem-bound kernel.
    if tile_n is None:
        tile_n = min(128, _round_up(N, 8))
        if N > 8 and _cdiv(N, tile_n) < 2:
            tile_n = _round_up(_cdiv(N, 2), 8)
    else:
        tile_n = min(_round_up(tile_n, 8), _round_up(N, 8))

    # --- tile_t: as large as fits a 16 MiB double-buffered input budget
    # (2 inputs x 2 buffers), capped at 8192, 128-aligned.
    itemsize = jnp.dtype(x.dtype).itemsize
    input_budget = 16 * 1024 * 1024
    cap = (input_budget // (4 * tile_n * itemsize)) // 128 * 128
    cap = max(128, min(cap, 8192))
    if tile_t is None:
        tile_t = min(cap, _round_up(T, 128))
    else:
        tile_t = min(_round_up(tile_t, 128), _round_up(T, 128))

    grid = (_cdiv(N, tile_n), _cdiv(T, tile_t))
    n_strips = tile_t // 128
    ragged_t = (T % tile_t) != 0

    # Explicit VMEM budget: double-buffered inputs + lane-partial scratch +
    # tiny output, plus margin.  Stays well under v7x's 64 MiB physical VMEM.
    vmem_need = (4 * tile_n * tile_t * itemsize   # 2 inputs x 2 buffers
                 + 5 * tile_n * 128 * 4           # lane-partial accumulators
                 + 2 * tile_n * 4)                # output double-buffer
    vmem_limit = int(max(vmem_need + (2 << 20), 24 << 20))

    cost = pl.CostEstimate(
        flops=8 * N * T,
        transcendentals=N,
        bytes_accessed=2 * N * T * itemsize + 4 * N,
    )

    losses = pl.pallas_call(
        functools.partial(_neg_pea_kernel, true_t=T, tile_t=tile_t,
                          n_strips=n_strips, ragged_t=ragged_t),
        out_shape=jax.ShapeDtypeStruct((N, 1), jnp.float32),
        grid_spec=pltpu.PrefetchScalarGridSpec(
            num_scalar_prefetch=0,
            grid=grid,
            in_specs=[
                pl.BlockSpec((tile_n, tile_t), lambda i, k: (i, k)),
                pl.BlockSpec((tile_n, tile_t), lambda i, k: (i, k)),
            ],
            out_specs=pl.BlockSpec((tile_n, 1), lambda i, k: (i, 0)),
            scratch_shapes=[pltpu.VMEM((tile_n, 128), jnp.float32)] * 5,
        ),
        compiler_params=pltpu.CompilerParams(
            dimension_semantics=("parallel", "arbitrary"),
            vmem_limit_bytes=vmem_limit),
        cost_estimate=cost,
    )(x, y)

    # Output has exactly N rows (edge blocks only write valid rows), so the
    # mean over rows is taken directly; no padded/NaN rows exist.
    return jnp.mean(losses[:, 0])


if __name__ == "__main__":
    key = jax.random.PRNGKey(0)
    k1, k2, k3, k4, k5, k6 = jax.random.split(key, 6)

    # Case 1: aligned shapes; tiles forced small so the T-reduction runs over
    # multiple grid steps (exercises the init/accumulate/finalize path).
    x1 = jax.random.normal(k1, (8, 512), dtype=jnp.float32)
    y1 = 0.5 * x1 + 0.5 * jax.random.normal(k2, (8, 512), dtype=jnp.float32)
    out1 = neg_pea_loss(x1, y1, use_pallas=True, tile_n=8, tile_t=256)
    ref1 = _neg_pea_loss_ref(x1, y1)

    # Case 2: unaligned (N=5, T=300) — exercises the no-pad ragged-T masking
    # and the partial output edge block.
    x2 = jax.random.normal(k3, (5, 300), dtype=jnp.float32)
    y2 = 0.5 * x2 + 0.5 * jax.random.normal(k4, (5, 300), dtype=jnp.float32)
    out2 = neg_pea_loss(x2, y2, use_pallas=True)
    ref2 = _neg_pea_loss_ref(x2, y2)

    # Case 3: 1-D inputs (PyTorch unsqueeze path) with bf16 at the HBM boundary.
    x3 = jax.random.normal(k5, (200,), dtype=jnp.float32).astype(jnp.bfloat16)
    y3 = (0.5 * x3.astype(jnp.float32)
          + 0.5 * jax.random.normal(k6, (200,), dtype=jnp.float32)).astype(jnp.bfloat16)
    out3 = neg_pea_loss(x3, y3, use_pallas=True)
    ref3 = _neg_pea_loss_ref(x3, y3)

    jax.block_until_ready((out1, out2, out3))

    assert jnp.allclose(out1, ref1, atol=1e-5, rtol=1e-5), (out1, ref1)
    assert jnp.allclose(out2, ref2, atol=1e-5, rtol=1e-5), (out2, ref2)
    assert jnp.allclose(out3, ref3, atol=2e-2, rtol=2e-2), (out3, ref3)

    print("KERNEL_OK")
</pallas_src>

<mosaic_0001>
module attributes {stable_mosaic.version = 11 : i64} {
  func.func @_neg_pea_kernel(%arg0: i32, %arg1: i32, %arg2: memref<8x256xf32, #tpu.memory_space<vmem>>, %arg3: memref<8x256xf32, #tpu.memory_space<vmem>>, %arg4: memref<8x1xf32, #tpu.memory_space<vmem>>, %arg5: memref<8x128xf32, #tpu.memory_space<vmem>>, %arg6: memref<8x128xf32, #tpu.memory_space<vmem>>, %arg7: memref<8x128xf32, #tpu.memory_space<vmem>>, %arg8: memref<8x128xf32, #tpu.memory_space<vmem>>, %arg9: memref<8x128xf32, #tpu.memory_space<vmem>>) attributes {dimension_semantics = [#tpu.dimension_semantics<parallel>, #tpu.dimension_semantics<arbitrary>], iteration_bounds = array<i64: 1, 2>, scalar_prefetch = 0 : i64, scratch_operands = 5 : i64, tpu.core_type = #tpu.core_type<tc>, window_params = [{transform_indices = @transform_0, window_bounds = array<i64: 8, 256>}, {transform_indices = @transform_1, window_bounds = array<i64: 8, 256>}, {transform_indices = @transform_2, window_bounds = array<i64: 8, 1>}]} {
    %c0_i32 = arith.constant 0 : i32
    %0 = arith.cmpi eq, %arg1, %c0_i32 : i32
    %1 = arith.extui %0 : i1 to i32
    %c0_i32_0 = arith.constant 0 : i32
    %2 = arith.cmpi ne, %1, %c0_i32_0 : i32
    scf.if %2 {
      %cst = arith.constant 0.000000e+00 : f32
      %56 = vector.broadcast %cst : f32 to vector<8x128xf32>
      %c0_48 = arith.constant 0 : index
      %c0_49 = arith.constant 0 : index
      %57 = vector.load %arg5[%c0_48, %c0_49] : memref<8x128xf32, #tpu.memory_space<vmem>>, vector<8x128xf32>
      tpu.vector_store %arg5[%c0_48, %c0_49], %56 {strides = array<i32>} : memref<8x128xf32, #tpu.memory_space<vmem>>, vector<8x128xf32>,
      %cst_50 = arith.constant 0.000000e+00 : f32
      %58 = vector.broadcast %cst_50 : f32 to vector<8x128xf32>
      %c0_51 = arith.constant 0 : index
      %c0_52 = arith.constant 0 : index
      %59 = vector.load %arg6[%c0_51, %c0_52] : memref<8x128xf32, #tpu.memory_space<vmem>>, vector<8x128xf32>
      tpu.vector_store %arg6[%c0_51, %c0_52], %58 {strides = array<i32>} : memref<8x128xf32, #tpu.memory_space<vmem>>, vector<8x128xf32>,
      %cst_53 = arith.constant 0.000000e+00 : f32
      %60 = vector.broadcast %cst_53 : f32 to vector<8x128xf32>
      %c0_54 = arith.constant 0 : index
      %c0_55 = arith.constant 0 : index
      %61 = vector.load %arg7[%c0_54, %c0_55] : memref<8x128xf32, #tpu.memory_space<vmem>>, vector<8x128xf32>
      tpu.vector_store %arg7[%c0_54, %c0_55], %60 {strides = array<i32>} : memref<8x128xf32, #tpu.memory_space<vmem>>, vector<8x128xf32>,
      %cst_56 = arith.constant 0.000000e+00 : f32
      %62 = vector.broadcast %cst_56 : f32 to vector<8x128xf32>
      %c0_57 = arith.constant 0 : index
      %c0_58 = arith.constant 0 : index
      %63 = vector.load %arg8[%c0_57, %c0_58] : memref<8x128xf32, #tpu.memory_space<vmem>>, vector<8x128xf32>
      tpu.vector_store %arg8[%c0_57, %c0_58], %62 {strides = array<i32>} : memref<8x128xf32, #tpu.memory_space<vmem>>, vector<8x128xf32>,
      %cst_59 = arith.constant 0.000000e+00 : f32
      %64 = vector.broadcast %cst_59 : f32 to vector<8x128xf32>
      %c0_60 = arith.constant 0 : index
      %c0_61 = arith.constant 0 : index
      %65 = vector.load %arg9[%c0_60, %c0_61] : memref<8x128xf32, #tpu.memory_space<vmem>>, vector<8x128xf32>
      tpu.vector_store %arg9[%c0_60, %c0_61], %64 {strides = array<i32>} : memref<8x128xf32, #tpu.memory_space<vmem>>, vector<8x128xf32>,
    } else {
    }
    %c0_i32_1 = arith.constant 0 : i32
    %c128_i32 = arith.constant 128 : i32
    %3 = arith.muli %c0_i32_1, %c128_i32 : i32
    %4 = tpu.assume_multiple %3, 128 : i32
    %c0 = arith.constant 0 : index
    %5 = arith.index_cast %4 : i32 to index
    %6 = vector.load %arg2[%c0, %5] : memref<8x256xf32, #tpu.memory_space<vmem>>, vector<8x128xf32>
    %7 = tpu.assume_multiple %3, 128 : i32
    %c0_2 = arith.constant 0 : index
    %8 = arith.index_cast %7 : i32 to index
    %9 = vector.load %arg3[%c0_2, %8] : memref<8x256xf32, #tpu.memory_space<vmem>>, vector<8x128xf32>
    %c0_3 = arith.constant 0 : index
    %c0_4 = arith.constant 0 : index
    %10 = vector.load %arg5[%c0_3, %c0_4] : memref<8x128xf32, #tpu.memory_space<vmem>>, vector<8x128xf32>
    %11 = arith.addf %10, %6 : vector<8x128xf32>
    %c0_5 = arith.constant 0 : index
    %c0_6 = arith.constant 0 : index
    %12 = vector.load %arg5[%c0_5, %c0_6] : memref<8x128xf32, #tpu.memory_space<vmem>>, vector<8x128xf32>
    tpu.vector_store %arg5[%c0_5, %c0_6], %11 {strides = array<i32>} : memref<8x128xf32, #tpu.memory_space<vmem>>, vector<8x128xf32>,
    %c0_7 = arith.constant 0 : index
    %c0_8 = arith.constant 0 : index
    %13 = vector.load %arg6[%c0_7, %c0_8] : memref<8x128xf32, #tpu.memory_space<vmem>>, vector<8x128xf32>
    %14 = arith.addf %13, %9 : vector<8x128xf32>
    %c0_9 = arith.constant 0 : index
    %c0_10 = arith.constant 0 : index
    %15 = vector.load %arg6[%c0_9, %c0_10] : memref<8x128xf32, #tpu.memory_space<vmem>>, vector<8x128xf32>
    tpu.vector_store %arg6[%c0_9, %c0_10], %14 {strides = array<i32>} : memref<8x128xf32, #tpu.memory_space<vmem>>, vector<8x128xf32>,
    %c0_11 = arith.constant 0 : index
    %c0_12 = arith.constant 0 : index
    %16 = vector.load %arg7[%c0_11, %c0_12] : memref<8x128xf32, #tpu.memory_space<vmem>>, vector<8x128xf32>
    %17 = arith.mulf %6, %9 : vector<8x128xf32>
    %18 = arith.addf %16, %17 : vector<8x128xf32>
    %c0_13 = arith.constant 0 : index
    %c0_14 = arith.constant 0 : index
    %19 = vector.load %arg7[%c0_13, %c0_14] : memref<8x128xf32, #tpu.memory_space<vmem>>, vector<8x128xf32>
    tpu.vector_store %arg7[%c0_13, %c0_14], %18 {strides = array<i32>} : memref<8x128xf32, #tpu.memory_space<vmem>>, vector<8x128xf32>,
    %c0_15 = arith.constant 0 : index
    %c0_16 = arith.constant 0 : index
    %20 = vector.load %arg8[%c0_15, %c0_16] : memref<8x128xf32, #tpu.memory_space<vmem>>, vector<8x128xf32>
    %21 = arith.mulf %6, %6 : vector<8x128xf32>
    %22 = arith.addf %20, %21 : vector<8x128xf32>
    %c0_17 = arith.constant 0 : index
    %c0_18 = arith.constant 0 : index
    %23 = vector.load %arg8[%c0_17, %c0_18] : memref<8x128xf32, #tpu.memory_space<vmem>>, vector<8x128xf32>
    tpu.vector_store %arg8[%c0_17, %c0_18], %22 {strides = array<i32>} : memref<8x128xf32, #tpu.memory_space<vmem>>, vector<8x128xf32>,
    %c0_19 = arith.constant 0 : index
    %c0_20 = arith.constant 0 : index
    %24 = vector.load %arg9[%c0_19, %c0_20] : memref<8x128xf32, #tpu.memory_space<vmem>>, vector<8x128xf32>
    %25 = arith.mulf %9, %9 : vector<8x128xf32>
    %26 = arith.addf %24, %25 : vector<8x128xf32>
    %c0_21 = arith.constant 0 : index
    %c0_22 = arith.constant 0 : index
    %27 = vector.load %arg9[%c0_21, %c0_22] : memref<8x128xf32, #tpu.memory_space<vmem>>, vector<8x128xf32>
    tpu.vector_store %arg9[%c0_21, %c0_22], %26 {strides = array<i32>} : memref<8x128xf32, #tpu.memory_space<vmem>>, vector<8x128xf32>,
    %c1_i32 = arith.constant 1 : i32
    %c128_i32_23 = arith.constant 128 : i32
    %28 = arith.muli %c1_i32, %c128_i32_23 : i32
    %29 = tpu.assume_multiple %28, 128 : i32
    %c0_24 = arith.constant 0 : index
    %30 = arith.index_cast %29 : i32 to index
    %31 = vector.load %arg2[%c0_24, %30] : memref<8x256xf32, #tpu.memory_space<vmem>>, vector<8x128xf32>
    %32 = tpu.assume_multiple %28, 128 : i32
    %c0_25 = arith.constant 0 : index
    %33 = arith.index_cast %32 : i32 to index
    %34 = vector.load %arg3[%c0_25, %33] : memref<8x256xf32, #tpu.memory_space<vmem>>, vector<8x128xf32>
    %c0_26 = arith.constant 0 : index
    %c0_27 = arith.constant 0 : index
    %35 = vector.load %arg5[%c0_26, %c0_27] : memref<8x128xf32, #tpu.memory_space<vmem>>, vector<8x128xf32>
    %36 = arith.addf %35, %31 : vector<8x128xf32>
    %c0_28 = arith.constant 0 : index
    %c0_29 = arith.constant 0 : index
    %37 = vector.load %arg5[%c0_28, %c0_29] : memref<8x128xf32, #tpu.memory_space<vmem>>, vector<8x128xf32>
    tpu.vector_store %arg5[%c0_28, %c0_29], %36 {strides = array<i32>} : memref<8x128xf32, #tpu.memory_space<vmem>>, vector<8x128xf32>,
    %c0_30 = arith.constant 0 : index
    %c0_31 = arith.constant 0 : index
    %38 = vector.load %arg6[%c0_30, %c0_31] : memref<8x128xf32, #tpu.memory_space<vmem>>, vector<8x128xf32>
    %39 = arith.addf %38, %34 : vector<8x128xf32>
    %c0_32 = arith.constant 0 : index
    %c0_33 = arith.constant 0 : index
    %40 = vector.load %arg6[%c0_32, %c0_33] : memref<8x128xf32, #tpu.memory_space<vmem>>, vector<8x128xf32>
    tpu.vector_store %arg6[%c0_32, %c0_33], %39 {strides = array<i32>} : memref<8x128xf32, #tpu.memory_space<vmem>>, vector<8x128xf32>,
    %c0_34 = arith.constant 0 : index
    %c0_35 = arith.constant 0 : index
    %41 = vector.load %arg7[%c0_34, %c0_35] : memref<8x128xf32, #tpu.memory_space<vmem>>, vector<8x128xf32>
    %42 = arith.mulf %31, %34 : vector<8x128xf32>
    %43 = arith.addf %41, %42 : vector<8x128xf32>
    %c0_36 = arith.constant 0 : index
    %c0_37 = arith.constant 0 : index
    %44 = vector.load %arg7[%c0_36, %c0_37] : memref<8x128xf32, #tpu.memory_space<vmem>>, vector<8x128xf32>
    tpu.vector_store %arg7[%c0_36, %c0_37], %43 {strides = array<i32>} : memref<8x128xf32, #tpu.memory_space<vmem>>, vector<8x128xf32>,
    %c0_38 = arith.constant 0 : index
    %c0_39 = arith.constant 0 : index
    %45 = vector.load %arg8[%c0_38, %c0_39] : memref<8x128xf32, #tpu.memory_space<vmem>>, vector<8x128xf32>
    %46 = arith.mulf %31, %31 : vector<8x128xf32>
    %47 = arith.addf %45, %46 : vector<8x128xf32>
    %c0_40 = arith.constant 0 : index
    %c0_41 = arith.constant 0 : index
    %48 = vector.load %arg8[%c0_40, %c0_41] : memref<8x128xf32, #tpu.memory_space<vmem>>, vector<8x128xf32>
    tpu.vector_store %arg8[%c0_40, %c0_41], %47 {strides = array<i32>} : memref<8x128xf32, #tpu.memory_space<vmem>>, vector<8x128xf32>,
    %c0_42 = arith.constant 0 : index
    %c0_43 = arith.constant 0 : index
    %49 = vector.load %arg9[%c0_42, %c0_43] : memref<8x128xf32, #tpu.memory_space<vmem>>, vector<8x128xf32>
    %50 = arith.mulf %34, %34 : vector<8x128xf32>
    %51 = arith.addf %49, %50 : vector<8x128xf32>
    %c0_44 = arith.constant 0 : index
    %c0_45 = arith.constant 0 : index
    %52 = vector.load %arg9[%c0_44, %c0_45] : memref<8x128xf32, #tpu.memory_space<vmem>>, vector<8x128xf32>
    tpu.vector_store %arg9[%c0_44, %c0_45], %51 {strides = array<i32>} : memref<8x128xf32, #tpu.memory_space<vmem>>, vector<8x128xf32>,
    %c2_i32 = arith.constant 2 : i32
    %c1_i32_46 = arith.constant 1 : i32
    %53 = arith.cmpi eq, %arg1, %c1_i32_46 : i32
    %54 = arith.extui %53 : i1 to i32
    %c0_i32_47 = arith.constant 0 : i32
    %55 = arith.cmpi ne, %54, %c0_i32_47 : i32
    scf.if %55 {
      %c0_48 = arith.constant 0 : index
      %c0_49 = arith.constant 0 : index
      %56 = vector.load %arg5[%c0_48, %c0_49] : memref<8x128xf32, #tpu.memory_space<vmem>>, vector<8x128xf32>
      %cst = arith.constant dense<0.000000e+00> : vector<8xf32>
      %57 = vector.multi_reduction <add>, %56, %cst [1] : vector<8x128xf32> to vector<8xf32>
      %58 = vector.shape_cast %57 : vector<8xf32> to vector<8x1xf32>
      %c0_50 = arith.constant 0 : index
      %c0_51 = arith.constant 0 : index
      %59 = vector.load %arg6[%c0_50, %c0_51] : memref<8x128xf32, #tpu.memory_space<vmem>>, vector<8x128xf32>
      %cst_52 = arith.constant dense<0.000000e+00> : vector<8xf32>
      %60 = vector.multi_reduction <add>, %59, %cst_52 [1] : vector<8x128xf32> to vector<8xf32>
      %61 = vector.shape_cast %60 : vector<8xf32> to vector<8x1xf32>
      %c0_53 = arith.constant 0 : index
      %c0_54 = arith.constant 0 : index
      %62 = vector.load %arg7[%c0_53, %c0_54] : memref<8x128xf32, #tpu.memory_space<vmem>>, vector<8x128xf32>
      %cst_55 = arith.constant dense<0.000000e+00> : vector<8xf32>
      %63 = vector.multi_reduction <add>, %62, %cst_55 [1] : vector<8x128xf32> to vector<8xf32>
      %64 = vector.shape_cast %63 : vector<8xf32> to vector<8x1xf32>
      %c0_56 = arith.constant 0 : index
      %c0_57 = arith.constant 0 : index
      %65 = vector.load %arg8[%c0_56, %c0_57] : memref<8x128xf32, #tpu.memory_space<vmem>>, vector<8x128xf32>
      %cst_58 = arith.constant dense<0.000000e+00> : vector<8xf32>
      %66 = vector.multi_reduction <add>, %65, %cst_58 [1] : vector<8x128xf32> to vector<8xf32>
      %67 = vector.shape_cast %66 : vector<8xf32> to vector<8x1xf32>
      %c0_59 = arith.constant 0 : index
      %c0_60 = arith.constant 0 : index
      %68 = vector.load %arg9[%c0_59, %c0_60] : memref<8x128xf32, #tpu.memory_space<vmem>>, vector<8x128xf32>
      %cst_61 = arith.constant dense<0.000000e+00> : vector<8xf32>
      %69 = vector.multi_reduction <add>, %68, %cst_61 [1] : vector<8x128xf32> to vector<8xf32>
      %70 = vector.shape_cast %69 : vector<8xf32> to vector<8x1xf32>
      %cst_62 = arith.constant 5.120000e+02 : f32
      %71 = vector.broadcast %cst_62 : f32 to vector<8x1xf32>
      %72 = arith.mulf %71, %64 : vector<8x1xf32>
      %73 = arith.mulf %58, %61 : vector<8x1xf32>
      %74 = arith.subf %72, %73 : vector<8x1xf32>
      %cst_63 = arith.constant 5.120000e+02 : f32
      %75 = vector.broadcast %cst_63 : f32 to vector<8x1xf32>
      %76 = arith.mulf %75, %67 : vector<8x1xf32>
      %77 = arith.mulf %58, %58 : vector<8x1xf32>
      %78 = arith.subf %76, %77 : vector<8x1xf32>
      %cst_64 = arith.constant 5.120000e+02 : f32
      %79 = vector.broadcast %cst_64 : f32 to vector<8x1xf32>
      %80 = arith.mulf %79, %70 : vector<8x1xf32>
      %81 = arith.mulf %61, %61 : vector<8x1xf32>
      %82 = arith.subf %80, %81 : vector<8x1xf32>
      %83 = arith.mulf %78, %82 : vector<8x1xf32>
      %84 = math.rsqrt %83 : vector<8x1xf32>
      %85 = arith.mulf %74, %84 : vector<8x1xf32>
      %cst_65 = arith.constant 1.000000e+00 : f32
      %86 = vector.broadcast %cst_65 : f32 to vector<8x1xf32>
      %87 = arith.subf %86, %85 : vector<8x1xf32>
      %c0_66 = arith.constant 0 : index
      %c0_67 = arith.constant 0 : index
      %88 = vector.load %arg4[%c0_66, %c0_67] : memref<8x1xf32, #tpu.memory_space<vmem>>, vector<8x1xf32>
      tpu.vector_store %arg4[%c0_66, %c0_67], %87 {strides = array<i32>} : memref<8x1xf32, #tpu.memory_space<vmem>>, vector<8x1xf32>,
    } else {
    }
    return
  }
  func.func @transform_0(%arg0: i32, %arg1: i32) -> (i32, i32) {
    %c0_i32 = arith.constant 0 : i32
    return %arg0, %arg1 : i32, i32
  }
  func.func @transform_1(%arg0: i32, %arg1: i32) -> (i32, i32) {
    %c0_i32 = arith.constant 0 : i32
    return %arg0, %arg1 : i32, i32
  }
  func.func @transform_2(%arg0: i32, %arg1: i32) -> (i32, i32) {
    %c0_i32 = arith.constant 0 : i32
    %c0_i32_0 = arith.constant 0 : i32
    return %arg0, %c0_i32 : i32, i32
  }
}

</mosaic_0001>

<llo_original>
// kernel: tpu_custom_call.1
$region0: #{tpu_custom_call.1}
  #allocation0 [shape = 'u32[]', space=smem, size = 0x4, offset = 0x4, fixed_abs, tag = 'smem constant byte address 0x4 - core index']
  #allocation1 [shape = 'u32[144,128]{1,0:T(1,128)}', space=vmem, size = 0x12000, scoped, tag = 'internal scratch']
  #allocation2 [shape = 'f32[8,128]{1,0:T(8,128)}', space=vmem, size = 0x1000, scoped, tag = 'scratch operand']
  #allocation3 [shape = 'f32[8,128]{1,0:T(8,128)}', space=vmem, size = 0x1000, scoped, tag = 'scratch operand']
  #allocation4 [shape = 'f32[8,128]{1,0:T(8,128)}', space=vmem, size = 0x1000, scoped, tag = 'scratch operand']
  #allocation5 [shape = 'f32[8,128]{1,0:T(8,128)}', space=vmem, size = 0x1000, scoped, tag = 'scratch operand']
  #allocation6 [shape = 'f32[8,128]{1,0:T(8,128)}', space=vmem, size = 0x1000, scoped, tag = 'scratch operand']
  %s0 = inlined_call_operand.hbm [shape: f32[8,512], index: 0, kind: input, shape index: {}]
  %s1 = inlined_call_operand.hbm [shape: f32[8,512], index: 1, kind: input, shape index: {}]
  %s2 = inlined_call_operand.vmem [shape: f32[8,1], index: 2, kind: output, shape index: {}]
  %s3 = sld [smem:[#allocation0]]
  $region57: #{tpu_custom_call.1} parent=0
    _
  %s5 = ssub.s32 1, %s3
  %s6 = scalar_select 0, %s5, %s3
  $region1: #{tpu_custom_call.1} parent=0
    #allocation7 [shape = 'u8[16384]{0}', space=vmem, size = 0x4000, scoped, tag = 'input window, operand 0']
    #allocation8 [shape = 's32[2]{0}', space=sflag, size = 0x8, scoped, tag = 'scoped memory for tpu_custom_call.1']
    #allocation9 [shape = 'u8[16384]{0}', space=vmem, size = 0x4000, scoped, tag = 'input window, operand 1']
    #allocation10 [shape = 's32[2]{0}', space=sflag, size = 0x8, scoped, tag = 'scoped memory for tpu_custom_call.1']
    %7 = vsyncpa [#allocation8], 0
    %s8 = scalar_lea.sflag [#allocation8], 1
    %9 = vsyncpa %s8, 0
    %10 = vsyncpa [#allocation10], 0
    %s11 = scalar_lea.sflag [#allocation10], 1
    %12 = vsyncpa %s11, 0
    loop: start=0, step=1, limit=4
    $region2: #{tpu_custom_call.1} parent=1 // loop_pre_header
      _
    $region3: #{tpu_custom_call.1} parent=1 // loop_header
      %s14 = sphi 0, %s18
      %p15 = scmp.ge.s32.totalorder %s14, 4
      %s21 = sphi 0, %s33
      %s22 = sphi 0, %s29
      %s23 = sphi 0, %s21
      %s24 = sphi 0, %s22
      %s25 = sphi 0, %s23
      %s26 = sphi 0, %s24
      %s38 = sphi 0, %s40
      %s41 = sphi 0, %s38
      %s42 = sphi 0, %s41
      %s58 = sphi 0, %s42
      %s66 = sphi 0, %s68
      %s69 = sphi 0, %s66
      %s70 = sphi 0, %s69
      %s86 = sphi 0, %s70
      %s92 = sphi 0, %s94
      %s95 = sphi 0, %s92
      %s96 = sphi 0, %s95
      %s112 = sphi 0, %s96
    $region4: #{tpu_custom_call.1} parent=1 // loop_header_branch
      %17 = sbr.rel (%p15) target = $region8
    $region5: #{tpu_custom_call.1} parent=1 // loop_body
      %s19 = ssub.s32 %s14, 1
      %s20 = ssub.s32 %s14, 2
      %s27 = sadd.s32 1, %s22
      %p28 = scmp.ge.s32.totalorder %s27, 2
      %s29 = scalar_select %p28, 0, %s27
      %s30 = sadd.s32 1, %s21
      %s31 = scalar_select %p28, %s30, %s21
      %p32 = scmp.ge.s32.totalorder %s31, 1
      %s33 = scalar_select %p32, 0, %s31
      %s34 = ssub.s32 %s21, %s33
      %s35 = ssub.s32 %s22, %s29
      %s36 = sor.u32 %s34, %s35
      %p37 = scmp.eq.s32.totalorder %s36, 0
      %s39 = sadd.s32 %s38, 1
      %s40 = scalar_select %p37, %s38, %s39
      %p43 = pneg %p37
      %p44 = scmp.eq.s32.totalorder %s14, 1
      %p45 = por %p43, %p44
      %p46 = scmp.ne.s32.totalorder %s38, %s41
      %p47 = scmp.eq.s32.totalorder %s14, 0
      %p48 = por %p46, %p47
      %p49 = scmp.ne.s32.totalorder %s38, %s41
      %p50 = scmp.eq.s32.totalorder %s19, 1
      %p51 = por %p49, %p50
      %p52 = scmp.ne.s32.totalorder %s41, %s42
      %p53 = scmp.eq.s32.totalorder %s19, 0
      %p54 = por %p52, %p53
      %p55 = scmp.ne.s32.totalorder %s41, %s42
      %p56 = scmp.eq.s32.totalorder %s20, 1
      %p57 = por %p55, %p56
      %p59 = scmp.ne.s32.totalorder %s42, %s58
      %p60 = scmp.eq.s32.totalorder %s20, 0
      %p61 = por %p59, %p60
      %s62 = ssub.s32 %s21, %s33
      %s63 = ssub.s32 %s22, %s29
      %s64 = sor.u32 %s62, %s63
      %p65 = scmp.eq.s32.totalorder %s64, 0
      %s67 = sadd.s32 %s66, 1
      %s68 = scalar_select %p65, %s66, %s67
      %p71 = pneg %p65
      %p72 = scmp.eq.s32.totalorder %s14, 1
      %p73 = por %p71, %p72
      %p74 = scmp.ne.s32.totalorder %s66, %s69
      %p75 = scmp.eq.s32.totalorder %s14, 0
      %p76 = por %p74, %p75
      %p77 = scmp.ne.s32.totalorder %s66, %s69
      %p78 = scmp.eq.s32.totalorder %s19, 1
      %p79 = por %p77, %p78
      %p80 = scmp.ne.s32.totalorder %s69, %s70
      %p81 = scmp.eq.s32.totalorder %s19, 0
      %p82 = por %p80, %p81
      %p83 = scmp.ne.s32.totalorder %s69, %s70
      %p84 = scmp.eq.s32.totalorder %s20, 1
      %p85 = por %p83, %p84
      %p87 = scmp.ne.s32.totalorder %s70, %s86
      %p88 = scmp.eq.s32.totalorder %s20, 0
      %p89 = por %p87, %p88
      %s90 = ssub.s32 %s21, %s33
      %p91 = scmp.eq.s32.totalorder %s90, 0
      %s93 = sadd.s32 %s92, 1
      %s94 = scalar_select %p91, %s92, %s93
      %p97 = pneg %p91
      %p98 = scmp.eq.s32.totalorder %s14, 1
      %p99 = por %p97, %p98
      %p100 = scmp.ne.s32.totalorder %s92, %s95
      %p101 = scmp.eq.s32.totalorder %s14, 0
      %p102 = por %p100, %p101
      %p103 = scmp.ne.s32.totalorder %s92, %s95
      %p104 = scmp.eq.s32.totalorder %s19, 1
      %p105 = por %p103, %p104
      %p106 = scmp.ne.s32.totalorder %s95, %s96
      %p107 = scmp.eq.s32.totalorder %s19, 0
      %p108 = por %p106, %p107
      %p109 = scmp.ne.s32.totalorder %s95, %s96
      %p110 = scmp.eq.s32.totalorder %s20, 1
      %p111 = por %p109, %p110
      %p113 = scmp.ne.s32.totalorder %s96, %s112
      %p114 = scmp.eq.s32.totalorder %s20, 0
      %p115 = por %p113, %p114
      %p116 = scmp.le.s32.totalorder 1, %s14
      %p117 = scmp.lt.s32.totalorder %s14, 3
      %p118 = pnand %p116, %p117
      %p119 = pneg %p118
      // Predicated region
      $region9: #{tpu_custom_call.1} parent=5 // pred_check
        _
      $region10: #{tpu_custom_call.1} parent=5 // pred_check_branch
        %121 = sbr.rel (%p118) target = $region12
      $region11: #{tpu_custom_call.1} parent=5 // pred_region
        %s122 = ssub.s32 %s14, 1
      $region12: #{tpu_custom_call.1} parent=5 // pred_fallthru
        _
      %p123 = scmp.lt.s32.totalorder %s14, 2
      // Predicated region
      $region13: #{tpu_custom_call.1} parent=5 // pred_check
        %p124 = pneg %p123
      $region14: #{tpu_custom_call.1} parent=5 // pred_check_branch
        %126 = sbr.rel (%p124) target = $region16
      $region15: #{tpu_custom_call.1} parent=5 // pred_region
        // Predicated region
        $region17: #{tpu_custom_call.1} parent=15 // pred_check
          %p127 = pneg %p48
        $region18: #{tpu_custom_call.1} parent=15 // pred_check_branch
          %129 = sbr.rel (%p127) target = $region20
        $region19: #{tpu_custom_call.1} parent=15 // pred_region
          %s130 = sand.u32 %s38, 1
          %s131 = scalar_lea.sflag [#allocation8], %s130
          %s132 = sand.u32 %s38, 1
          %s133 = smul.addr %s132, 16
          %s134 = scalar_lea.vmem [#allocation7], %s133
          %s135 = smul.u32 2, %s22
          %s137 = ssub.s32 256, 256
          %138 = vsyncadd %s131, %s137
          %s139 = smul.addr %s21, 4
          %s140 = sadd.s32 %s135, %s139
          %s141 = smul.addr %s140, 128
          %s142 = scalar_lea.hbm %s0, %s141
          %s144 = sshll.u32 %s134, 4
          %s145 = int_to_ptr.vmem [resolvable:$true] %s144
          %147 = dma.hbm_to_vmem [thread:$0]  %s142, 256, %s145, %s131
        $region20: #{tpu_custom_call.1} parent=15 // pred_fallthru
          _
        // Predicated region
        $region21: #{tpu_custom_call.1} parent=15 // pred_check
          %p148 = pneg %p76
        $region22: #{tpu_custom_call.1} parent=15 // pred_check_branch
          %150 = sbr.rel (%p148) target = $region24
        $region23: #{tpu_custom_call.1} parent=15 // pred_region
          %s151 = sand.u32 %s66, 1
          %s152 = scalar_lea.sflag [#allocation10], %s151
          %s153 = sand.u32 %s66, 1
          %s154 = smul.addr %s153, 16
          %s155 = scalar_lea.vmem [#allocation9], %s154
          %s156 = smul.u32 2, %s22
          %s158 = ssub.s32 256, 256
          %159 = vsyncadd %s152, %s158
          %s160 = smul.addr %s21, 4
          %s161 = sadd.s32 %s156, %s160
          %s162 = smul.addr %s161, 128
          %s163 = scalar_lea.hbm %s1, %s162
          %s165 = sshll.u32 %s155, 4
          %s166 = int_to_ptr.vmem [resolvable:$true] %s165
          %168 = dma.hbm_to_vmem [thread:$0]  %s163, 256, %s166, %s152
        $region24: #{tpu_custom_call.1} parent=15 // pred_fallthru
          _
      $region16: #{tpu_custom_call.1} parent=5 // pred_fallthru
        _
      %p169 = scmp.le.s32.totalorder 1, %s14
      %p170 = scmp.lt.s32.totalorder %s14, 3
      %p171 = pnand %p169, %p170
      %p172 = pneg %p171
      // Predicated region
      $region25: #{tpu_custom_call.1} parent=5 // pred_check
        _
      $region26: #{tpu_custom_call.1} parent=5 // pred_check_branch
        %174 = sbr.rel (%p171) target = $region28
      $region27: #{tpu_custom_call.1} parent=5 // pred_region
        %s175 = ssub.s32 %s14, 1
        %s176 = sand.u32 %s41, 1
        %s177 = scalar_lea.sflag [#allocation8], %s176
        %s178 = sand.u32 %s41, 1
        %s179 = smul.addr %s178, 16
        %s180 = scalar_lea.vmem [#allocation7], %s179
        // Predicated region
        $region29: #{tpu_custom_call.1} parent=27 // pred_check
          %p181 = pneg %p54
        $region30: #{tpu_custom_call.1} parent=27 // pred_check_branch
          %183 = sbr.rel (%p181) target = $region32
        $region31: #{tpu_custom_call.1} parent=27 // pred_region
          %184 = dma.done %s177, 256
        $region32: #{tpu_custom_call.1} parent=27 // pred_fallthru
          _
        %s185 = sand.u32 %s69, 1
        %s186 = scalar_lea.sflag [#allocation10], %s185
        %s187 = sand.u32 %s69, 1
        %s188 = smul.addr %s187, 16
        %s189 = scalar_lea.vmem [#allocation9], %s188
        // Predicated region
        $region33: #{tpu_custom_call.1} parent=27 // pred_check
          %p190 = pneg %p82
        $region34: #{tpu_custom_call.1} parent=27 // pred_check_branch
          %192 = sbr.rel (%p190) target = $region36
        $region35: #{tpu_custom_call.1} parent=27 // pred_region
          %193 = dma.done %s186, 256
        $region36: #{tpu_custom_call.1} parent=27 // pred_fallthru
          _
        %s194 = sand.u32 %s41, 1
        %s195 = scalar_lea.sflag [#allocation8], %s194
        %s196 = sand.u32 %s41, 1
        %s197 = smul.addr %s196, 16
        %s198 = scalar_lea.vmem [#allocation7], %s197
        %p199 = pneg %p54
        %p200 = pneg %p51
        %s201 = sand.u32 %s69, 1
        %s202 = scalar_lea.sflag [#allocation10], %s201
        %s203 = sand.u32 %s69, 1
        %s204 = smul.addr %s203, 16
        %s205 = scalar_lea.vmem [#allocation9], %s204
        %p206 = pneg %p82
        %p207 = pneg %p79
        %p208 = pneg %p108
        %p209 = pneg %p105
        %p210 = scmp.lt.s32.totalorder %s23, 0
        %s211 = scalar_select %p210, %s23, 0
        %s212 = smul.addr %s211, 8
        %s213 = scalar_lea.vmem %s2, %s212
        %s214 = smul.u32 2, %s24
        %s215 = smul.u32 2, %s24
        %p216 = scmp.lt.s32.totalorder %s23, 0
        %s217 = scalar_select %p216, %s23, 0
        %s218 = smul.addr %s217, 8
        %s219 = scalar_lea.vmem %s2, %s218
        %p220 = scmp.eq.s32.totalorder %s24, 0
        // Predicated region
        $region37: #{tpu_custom_call.1} parent=27 // pred_check
          %p221 = pneg %p220
        $region38: #{tpu_custom_call.1} parent=27 // pred_check_branch
          %223 = sbr.rel (%p221) target = $region40
        $region39: #{tpu_custom_call.1} parent=27 // pred_region
          %224 = vst [vmem:[#allocation2] sm:$0xff] 0.0
          %225 = vst [vmem:[#allocation3] sm:$0xff] 0.0
          %226 = vst [vmem:[#allocation4] sm:$0xff] 0.0
          %227 = vst [vmem:[#allocation5] sm:$0xff] 0.0
          %228 = vst [vmem:[#allocation6] sm:$0xff] 0.0
        $region40: #{tpu_custom_call.1} parent=27 // pred_fallthru
          _
        %v229 = vld [vmem:[%s180] sm:$0xff]
        %v230 = vld [vmem:[%s189] sm:$0xff]
        %v231 = vld [vmem:[#allocation2] sm:$0xff]
        %v232 = vadd.f32 %v231, %v229
        %233 = vst [vmem:[#allocation2] sm:$0xff] %v232
        %v234 = vld [vmem:[#allocation3] sm:$0xff]
        %v235 = vadd.f32 %v234, %v230
        %236 = vst [vmem:[#allocation3] sm:$0xff] %v235
        %v237 = vld [vmem:[#allocation4] sm:$0xff]
        %v238 = vmul.f32 %v229, %v230
        %v239 = vadd.f32 %v237, %v238
        %240 = vst [vmem:[#allocation4] sm:$0xff] %v239
        %v241 = vld [vmem:[#allocation5] sm:$0xff]
        %v242 = vmul.f32 %v229, %v229
        %v243 = vadd.f32 %v241, %v242
        %244 = vst [vmem:[#allocation5] sm:$0xff] %v243
        %v245 = vld [vmem:[#allocation6] sm:$0xff]
        %v246 = vmul.f32 %v230, %v230
        %v247 = vadd.f32 %v245, %v246
        %248 = vst [vmem:[#allocation6] sm:$0xff] %v247
        %s249 = scalar_lea.vmem %s180, 8 [#allocation7]
        %v250 = vld [vmem:[%s249] sm:$0xff]
        %s251 = scalar_lea.vmem %s189, 8 [#allocation9]
        %v252 = vld [vmem:[%s251] sm:$0xff]
        %v253 = vld [vmem:[#allocation2] sm:$0xff]
        %v254 = vadd.f32 %v253, %v250
        %255 = vst [vmem:[#allocation2] sm:$0xff] %v254
        %v256 = vld [vmem:[#allocation3] sm:$0xff]
        %v257 = vadd.f32 %v256, %v252
        %258 = vst [vmem:[#allocation3] sm:$0xff] %v257
        %v259 = vld [vmem:[#allocation4] sm:$0xff]
        %v260 = vmul.f32 %v250, %v252
        %v261 = vadd.f32 %v259, %v260
        %262 = vst [vmem:[#allocation4] sm:$0xff] %v261
        %v263 = vld [vmem:[#allocation5] sm:$0xff]
        %v264 = vmul.f32 %v250, %v250
        %v265 = vadd.f32 %v263, %v264
        %266 = vst [vmem:[#allocation5] sm:$0xff] %v265
        %v267 = vld [vmem:[#allocation6] sm:$0xff]
        %v268 = vmul.f32 %v252, %v252
        %v269 = vadd.f32 %v267, %v268
        %270 = vst [vmem:[#allocation6] sm:$0xff] %v269
        %p271 = scmp.eq.s32.totalorder %s24, 1
        // Predicated region
        $region41: #{tpu_custom_call.1} parent=27 // pred_check
          %p272 = pneg %p271
        $region42: #{tpu_custom_call.1} parent=27 // pred_check_branch
          %274 = sbr.rel (%p272) target = $region44
        $region43: #{tpu_custom_call.1} parent=27 // pred_region
          %v275 = vld [vmem:[#allocation2] sm:$0xff]
          %276 = vadd.xlane.f32.xlu0 %v275
          %v277 = vpop.xlane.xlu0 %276
          %v278 = vld [vmem:[#allocation3] sm:$0xff]
          %279 = vadd.xlane.f32.xlu0 %v278
          %v280 = vpop.xlane.xlu0 %279
          %v281 = vld [vmem:[#allocation4] sm:$0xff]
          %282 = vadd.xlane.f32.xlu0 %v281
          %v283 = vpop.xlane.xlu0 %282
          %v284 = vld [vmem:[#allocation5] sm:$0xff]
          %285 = vadd.xlane.f32.xlu0 %v284
          %v286 = vpop.xlane.xlu0 %285
          %v287 = vld [vmem:[#allocation6] sm:$0xff]
          %288 = vadd.xlane.f32.xlu0 %v287
          %v289 = vpop.xlane.xlu0 %288
          %v290 = vmul.f32 %v283, 512.0
          %v291 = vmul.f32 %v277, %v280
          %v292 = vsub.f32 %v290, %v291
          %v293 = vmul.f32 %v286, 512.0
          %v294 = vmul.f32 %v277, %v277
          %v295 = vsub.f32 %v293, %v294
          %v296 = vmul.f32 %v289, 512.0
          %v297 = vmul.f32 %v280, %v280
          %v298 = vsub.f32 %v296, %v297
          %v299 = vmul.f32 %v295, %v298
          %v300 = vrsqrt.pop %v299
          %v301 = vmul.f32 %v292, %v300
          %v302 = vsub.f32 1.0, %v301
          %vm303 = vcmask 7168
          %304 = vst.msk [vmem:[%s219] sm:$0xff] %vm303, %v302
        $region44: #{tpu_custom_call.1} parent=27 // pred_fallthru
          _
        %p305 = scmp.lt.s32.totalorder %s23, 0
        %s306 = scalar_select %p305, %s23, 0
        %s307 = smul.addr %s306, 8
        %s308 = scalar_lea.vmem %s2, %s307
        // Predicated region
        $region45: #{tpu_custom_call.1} parent=27 // pred_check
          %p309 = pneg %p105
        $region46: #{tpu_custom_call.1} parent=27 // pred_check_branch
          %311 = sbr.rel (%p309) target = $region48
        $region47: #{tpu_custom_call.1} parent=27 // pred_region
          _
        $region48: #{tpu_custom_call.1} parent=27 // pred_fallthru
          _
        // Predicated region
        $region49: #{tpu_custom_call.1} parent=27 // pred_check
          %p312 = pneg %p105
        $region50: #{tpu_custom_call.1} parent=27 // pred_check_branch
          %314 = sbr.rel (%p312) target = $region52
        $region51: #{tpu_custom_call.1} parent=27 // pred_region
          %p315 = scmp.lt.s32.totalorder %s23, 0
          %s316 = scalar_select %p315, %s23, 0
          %s317 = smul.addr %s316, 8
          %s318 = scalar_lea.vmem %s2, %s317
        $region52: #{tpu_custom_call.1} parent=27 // pred_fallthru
          _
      $region28: #{tpu_custom_call.1} parent=5 // pred_fallthru
        _
      %p319 = scmp.le.s32.totalorder 2, %s14
      // Predicated region
      $region53: #{tpu_custom_call.1} parent=5 // pred_check
        %p320 = pneg %p319
      $region54: #{tpu_custom_call.1} parent=5 // pred_check_branch
        %322 = sbr.rel (%p320) target = $region56
      $region55: #{tpu_custom_call.1} parent=5 // pred_region
        %s323 = ssub.s32 %s14, 2
      $region56: #{tpu_custom_call.1} parent=5 // pred_fallthru
        _
    $region6: #{tpu_custom_call.1} parent=1 // loop_footer
      %s18 = sadd.s32 1, %s14
    $region7: #{tpu_custom_call.1} parent=1 // loop_footer_branch
      %13 = sbr.rel target = $region3
    $region8: #{tpu_custom_call.1} parent=1 // loop_exit
      _
    %324 = vsyncpa [#allocation8], 1
    %s325 = scalar_lea.sflag [#allocation8], 1
    %326 = vsyncpa %s325, 1
    %327 = vsyncpa [#allocation10], 1
    %s328 = scalar_lea.sflag [#allocation10], 1
    %329 = vsyncpa %s328, 1

</llo_original>
